<compile_context>
chip_gen: v7x
topology: tpu7x:2x2x1
jax: 0.10.0
libtpu: 0.0.40
codegen_flags: <defaults>
</compile_context>

<pallas_src>
import jax
import jax.numpy as jnp
from jax.experimental import pallas as pl
from jax.experimental.pallas import tpu as pltpu


_MIN_TB = 128    # batch-tile granularity (fills the MXU M dimension)
_MAX_TB = 2048   # cap keeps intermediates + double-buffers well under VMEM


def qnetwork_kernel(x_ref,
                    w1_ref, b1_ref,
                    w2_ref, b2_ref,
                    w3_ref, b3_ref,
                    w4_ref, b4_ref,
                    o_ref):
    # x arrives as f32; cast to bf16 in-kernel so the wrapper doesn't do an
    # extra HBM pass just to change dtype.
    h = x_ref[...].astype(jnp.bfloat16)
    # fc1 + relu (bf16 x bf16 -> f32 accumulate on the MXU; bias/ReLU in f32)
    h = jnp.dot(h, w1_ref[...], preferred_element_type=jnp.float32)
    h = jnp.maximum(h + b1_ref[...], 0.0).astype(jnp.bfloat16)
    # fc2 + relu
    h = jnp.dot(h, w2_ref[...], preferred_element_type=jnp.float32)
    h = jnp.maximum(h + b2_ref[...], 0.0).astype(jnp.bfloat16)
    # fc3 + relu
    h = jnp.dot(h, w3_ref[...], preferred_element_type=jnp.float32)
    h = jnp.maximum(h + b3_ref[...], 0.0).astype(jnp.bfloat16)
    # fc4 (no activation), bias add in f32
    h = jnp.dot(h, w4_ref[...], preferred_element_type=jnp.float32)
    o_ref[...] = (h + b4_ref[...]).astype(o_ref.dtype)


def _resident_spec(shape):
    """Full-array block with a constant block index: DMA'd once, stays
    VMEM-resident across all batch-tile grid steps. `shape` is bound through
    a default arg to avoid the late-binding-lambda bug."""
    return pl.BlockSpec(shape, lambda i, _nd=len(shape): (0,) * _nd)


def _round_up(x, m):
    return (x + m - 1) // m * m


def _choose_tb(b_pad):
    """Largest multiple of 128 dividing b_pad, capped at _MAX_TB, preferring
    >=2 grid steps so v7x's two TensorCores both get batch tiles."""
    cap = min(_MAX_TB, b_pad)
    if b_pad >= 2 * _MIN_TB:
        cap = min(cap, b_pad // 2)
    tb = _MIN_TB
    for cand in range(_MIN_TB, cap + 1, _MIN_TB):
        if b_pad % cand == 0:
            tb = cand
    return tb


def prepare_params(params):
    """One-time prep: bf16 weights, f32 biases. Call once outside the rollout
    loop so the forward path carries no per-call cast/pad ops."""
    prepared = {}
    for i in range(1, 5):
        prepared[f"w{i}"] = params[f"w{i}"].astype(jnp.bfloat16)
        prepared[f"b{i}"] = params[f"b{i}"].astype(jnp.float32)
    return prepared


def qnetwork_forward(x, prepared):
    """x: (B, input_size) float32. prepared: output of prepare_params
    (weights bf16 stored as (in_features, out_features), biases f32 (1, out))."""
    B, in_size = x.shape
    out_size = prepared["w4"].shape[1]

    # Pad only the ragged remainder of the batch (no copy if already aligned).
    b_pad = _round_up(max(B, _MIN_TB), _MIN_TB)
    if b_pad != B:
        x_p = jnp.zeros((b_pad, in_size), x.dtype).at[:B].set(x)
    else:
        x_p = x

    TB = _choose_tb(b_pad)
    n_tiles = b_pad // TB

    operands = (x_p,
                prepared["w1"], prepared["b1"],
                prepared["w2"], prepared["b2"],
                prepared["w3"], prepared["b3"],
                prepared["w4"], prepared["b4"])

    in_specs = [pl.BlockSpec((TB, in_size), lambda i: (i, 0))]  # batch tiles
    in_specs += [_resident_spec(op.shape) for op in operands[1:]]
    # Output block's last dim equals the full array dim (legal even when < 128)
    # -> no 128-lane padding of the tiny Q-value output stream.
    out_spec = pl.BlockSpec((TB, out_size), lambda i: (i, 0))

    # Advisory cost estimate so XLA can schedule/overlap around this call.
    flops = 2 * b_pad * (in_size * 256 + 256 * 128 + 128 * 64 + 64 * out_size)
    bytes_accessed = (
        x_p.size * 4
        + sum(prepared[f"w{i}"].size * 2 for i in range(1, 5))
        + sum(prepared[f"b{i}"].size * 4 for i in range(1, 5))
        + b_pad * out_size * 4
    )

    out = pl.pallas_call(
        qnetwork_kernel,
        out_shape=jax.ShapeDtypeStruct((b_pad, out_size), jnp.float32),
        grid=(n_tiles,),
        in_specs=in_specs,
        out_specs=out_spec,
        compiler_params=pltpu.CompilerParams(
            dimension_semantics=("parallel",)),
        cost_estimate=pl.CostEstimate(
            flops=flops, transcendentals=0, bytes_accessed=bytes_accessed),
    )(*operands)

    return out[:B]


def init_qnetwork_params(input_size, output_size, key):
    """Deterministic init matching nn.Linear shapes (transposed to (in, out))."""
    sizes = [(input_size, 256), (256, 128), (128, 64), (64, output_size)]
    params = {}
    keys = jax.random.split(key, 2 * len(sizes))
    for i, (fan_in, fan_out) in enumerate(sizes):
        bound = 1.0 / jnp.sqrt(fan_in)  # PyTorch default uniform bound
        w = jax.random.uniform(keys[2 * i], (fan_in, fan_out),
                               minval=-bound, maxval=bound, dtype=jnp.float32)
        b = jax.random.uniform(keys[2 * i + 1], (1, fan_out),
                               minval=-bound, maxval=bound, dtype=jnp.float32)
        params[f"w{i + 1}"] = w
        params[f"b{i + 1}"] = b
    return params


if __name__ == "__main__":
    key = jax.random.PRNGKey(0)
    k_param, k_x, k_x2 = jax.random.split(key, 3)

    input_size = 16   # e.g. state dimension
    output_size = 4   # e.g. number of actions

    params = init_qnetwork_params(input_size, output_size, k_param)
    prepared = prepare_params(params)   # one-time bf16 cast, outside forward

    # Reference mirroring the kernel numerics (bf16 operands, f32 accumulation).
    def ref(x, p):
        def lin(h, w, b):
            return jnp.dot(h.astype(jnp.bfloat16), w.astype(jnp.bfloat16),
                           preferred_element_type=jnp.float32) + b
        h = jnp.maximum(lin(x, p["w1"], p["b1"]), 0.0)
        h = jnp.maximum(lin(h, p["w2"], p["b2"]), 0.0)
        h = jnp.maximum(lin(h, p["w3"], p["b3"]), 0.0)
        return lin(h, p["w4"], p["b4"])

    def ref_f32(x, p):
        h = jnp.maximum(x @ p["w1"] + p["b1"], 0.0)
        h = jnp.maximum(h @ p["w2"] + p["b2"], 0.0)
        h = jnp.maximum(h @ p["w3"] + p["b3"], 0.0)
        return h @ p["w4"] + p["b4"]

    # Small-batch path (single tile, ragged pad).
    batch = 8
    x = jax.random.normal(k_x, (batch, input_size), dtype=jnp.float32)
    out = jax.block_until_ready(qnetwork_forward(x, prepared))
    assert out.shape == (batch, output_size)
    assert jnp.allclose(out, ref(x, params), atol=2e-3, rtol=2e-3)
    assert jnp.allclose(out, ref_f32(x, params), atol=5e-2, rtol=5e-2)

    # Larger batch path (multiple grid tiles + ragged remainder padding).
    batch2 = 300
    x2 = jax.random.normal(k_x2, (batch2, input_size), dtype=jnp.float32)
    out2 = jax.block_until_ready(qnetwork_forward(x2, prepared))
    assert out2.shape == (batch2, output_size)
    assert jnp.allclose(out2, ref(x2, params), atol=2e-3, rtol=2e-3)
    assert jnp.allclose(out2, ref_f32(x2, params), atol=5e-2, rtol=5e-2)

    print("KERNEL_OK")
</pallas_src>

<mosaic_0001>
module attributes {stable_mosaic.version = 11 : i64} {
  func.func @qnetwork_kernel(%arg0: i32, %arg1: memref<128x16xf32, #tpu.memory_space<vmem>>, %arg2: memref<16x256xbf16, #tpu.memory_space<vmem>>, %arg3: memref<1x256xf32, #tpu.memory_space<vmem>>, %arg4: memref<256x128xbf16, #tpu.memory_space<vmem>>, %arg5: memref<1x128xf32, #tpu.memory_space<vmem>>, %arg6: memref<128x64xbf16, #tpu.memory_space<vmem>>, %arg7: memref<1x64xf32, #tpu.memory_space<vmem>>, %arg8: memref<64x4xbf16, #tpu.memory_space<vmem>>, %arg9: memref<1x4xf32, #tpu.memory_space<vmem>>, %arg10: memref<128x4xf32, #tpu.memory_space<vmem>>) attributes {dimension_semantics = [#tpu.dimension_semantics<parallel>], iteration_bounds = array<i64: 1>, scalar_prefetch = 0 : i64, scratch_operands = 0 : i64, tpu.core_type = #tpu.core_type<tc>, window_params = [{transform_indices = @transform_0, window_bounds = array<i64: 128, 16>}, {pipeline_mode = #tpu.pipeline_mode<synchronous>, transform_indices = @transform_1, window_bounds = array<i64: 16, 256>}, {pipeline_mode = #tpu.pipeline_mode<synchronous>, transform_indices = @transform_2, window_bounds = array<i64: 1, 256>}, {pipeline_mode = #tpu.pipeline_mode<synchronous>, transform_indices = @transform_3, window_bounds = array<i64: 256, 128>}, {pipeline_mode = #tpu.pipeline_mode<synchronous>, transform_indices = @transform_4, window_bounds = array<i64: 1, 128>}, {pipeline_mode = #tpu.pipeline_mode<synchronous>, transform_indices = @transform_5, window_bounds = array<i64: 128, 64>}, {pipeline_mode = #tpu.pipeline_mode<synchronous>, transform_indices = @transform_6, window_bounds = array<i64: 1, 64>}, {pipeline_mode = #tpu.pipeline_mode<synchronous>, transform_indices = @transform_7, window_bounds = array<i64: 64, 4>}, {pipeline_mode = #tpu.pipeline_mode<synchronous>, transform_indices = @transform_8, window_bounds = array<i64: 1, 4>}, {transform_indices = @transform_9, window_bounds = array<i64: 128, 4>}]} {
    %c0 = arith.constant 0 : index
    %c0_0 = arith.constant 0 : index
    %0 = vector.load %arg1[%c0, %c0_0] : memref<128x16xf32, #tpu.memory_space<vmem>>, vector<128x16xf32>
    %1 = arith.truncf %0 : vector<128x16xf32> to vector<128x16xbf16>
    %c0_1 = arith.constant 0 : index
    %c0_2 = arith.constant 0 : index
    %2 = vector.load %arg2[%c0_1, %c0_2] : memref<16x256xbf16, #tpu.memory_space<vmem>>, vector<16x256xbf16>
    %cst = arith.constant dense<0.000000e+00> : vector<128x256xf32>
    %3 = tpu.matmul %1, %2, %cst {dimension_numbers = #tpu.dot_dimension_numbers<[1], [0], [0], [1], [0, 0, 1, 1], [], []>} : vector<128x16xbf16>, vector<16x256xbf16>, vector<128x256xf32> -> vector<128x256xf32>
    %c0_3 = arith.constant 0 : index
    %c0_4 = arith.constant 0 : index
    %4 = vector.load %arg3[%c0_3, %c0_4] : memref<1x256xf32, #tpu.memory_space<vmem>>, vector<1x256xf32>
    %5 = vector.broadcast %4 : vector<1x256xf32> to vector<128x256xf32>
    %6 = arith.addf %3, %5 : vector<128x256xf32>
    %cst_5 = arith.constant 0.000000e+00 : f32
    %7 = vector.broadcast %cst_5 : f32 to vector<128x256xf32>
    %8 = arith.maximumf %6, %7 : vector<128x256xf32>
    %9 = arith.truncf %8 : vector<128x256xf32> to vector<128x256xbf16>
    %c0_6 = arith.constant 0 : index
    %c0_7 = arith.constant 0 : index
    %10 = vector.load %arg4[%c0_6, %c0_7] : memref<256x128xbf16, #tpu.memory_space<vmem>>, vector<256x128xbf16>
    %cst_8 = arith.constant dense<0.000000e+00> : vector<128x128xf32>
    %11 = tpu.matmul %9, %10, %cst_8 {dimension_numbers = #tpu.dot_dimension_numbers<[1], [0], [0], [1], [0, 0, 1, 1], [], []>} : vector<128x256xbf16>, vector<256x128xbf16>, vector<128x128xf32> -> vector<128x128xf32>
    %c0_9 = arith.constant 0 : index
    %c0_10 = arith.constant 0 : index
    %12 = vector.load %arg5[%c0_9, %c0_10] : memref<1x128xf32, #tpu.memory_space<vmem>>, vector<1x128xf32>
    %13 = vector.broadcast %12 : vector<1x128xf32> to vector<128x128xf32>
    %14 = arith.addf %11, %13 : vector<128x128xf32>
    %cst_11 = arith.constant 0.000000e+00 : f32
    %15 = vector.broadcast %cst_11 : f32 to vector<128x128xf32>
    %16 = arith.maximumf %14, %15 : vector<128x128xf32>
    %17 = arith.truncf %16 : vector<128x128xf32> to vector<128x128xbf16>
    %c0_12 = arith.constant 0 : index
    %c0_13 = arith.constant 0 : index
    %18 = vector.load %arg6[%c0_12, %c0_13] : memref<128x64xbf16, #tpu.memory_space<vmem>>, vector<128x64xbf16>
    %cst_14 = arith.constant dense<0.000000e+00> : vector<128x64xf32>
    %19 = tpu.matmul %17, %18, %cst_14 {dimension_numbers = #tpu.dot_dimension_numbers<[1], [0], [0], [1], [0, 0, 1, 1], [], []>} : vector<128x128xbf16>, vector<128x64xbf16>, vector<128x64xf32> -> vector<128x64xf32>
    %c0_15 = arith.constant 0 : index
    %c0_16 = arith.constant 0 : index
    %20 = vector.load %arg7[%c0_15, %c0_16] : memref<1x64xf32, #tpu.memory_space<vmem>>, vector<1x64xf32>
    %21 = vector.broadcast %20 : vector<1x64xf32> to vector<128x64xf32>
    %22 = arith.addf %19, %21 : vector<128x64xf32>
    %cst_17 = arith.constant 0.000000e+00 : f32
    %23 = vector.broadcast %cst_17 : f32 to vector<128x64xf32>
    %24 = arith.maximumf %22, %23 : vector<128x64xf32>
    %25 = arith.truncf %24 : vector<128x64xf32> to vector<128x64xbf16>
    %c0_18 = arith.constant 0 : index
    %c0_19 = arith.constant 0 : index
    %26 = vector.load %arg8[%c0_18, %c0_19] : memref<64x4xbf16, #tpu.memory_space<vmem>>, vector<64x4xbf16>
    %cst_20 = arith.constant dense<0.000000e+00> : vector<128x4xf32>
    %27 = tpu.matmul %25, %26, %cst_20 {dimension_numbers = #tpu.dot_dimension_numbers<[1], [0], [0], [1], [0, 0, 1, 1], [], []>} : vector<128x64xbf16>, vector<64x4xbf16>, vector<128x4xf32> -> vector<128x4xf32>
    %c0_21 = arith.constant 0 : index
    %c0_22 = arith.constant 0 : index
    %28 = vector.load %arg9[%c0_21, %c0_22] : memref<1x4xf32, #tpu.memory_space<vmem>>, vector<1x4xf32>
    %29 = vector.broadcast %28 : vector<1x4xf32> to vector<128x4xf32>
    %30 = arith.addf %27, %29 : vector<128x4xf32>
    %c0_23 = arith.constant 0 : index
    %c0_24 = arith.constant 0 : index
    %31 = vector.load %arg10[%c0_23, %c0_24] : memref<128x4xf32, #tpu.memory_space<vmem>>, vector<128x4xf32>
    tpu.vector_store %arg10[%c0_23, %c0_24], %30 {strides = array<i32>} : memref<128x4xf32, #tpu.memory_space<vmem>>, vector<128x4xf32>,
    return
  }
  func.func @transform_0(%arg0: i32) -> (i32, i32) {
    %c0_i32 = arith.constant 0 : i32
    %c0_i32_0 = arith.constant 0 : i32
    return %arg0, %c0_i32 : i32, i32
  }
  func.func @transform_1(%arg0: i32) -> (i32, i32) {
    %c0_i32 = arith.constant 0 : i32
    %c0_i32_0 = arith.constant 0 : i32
    %c0_i32_1 = arith.constant 0 : i32
    return %c0_i32, %c0_i32_0 : i32, i32
  }
  func.func @transform_2(%arg0: i32) -> (i32, i32) {
    %c0_i32 = arith.constant 0 : i32
    %c0_i32_0 = arith.constant 0 : i32
    %c0_i32_1 = arith.constant 0 : i32
    return %c0_i32, %c0_i32_0 : i32, i32
  }
  func.func @transform_3(%arg0: i32) -> (i32, i32) {
    %c0_i32 = arith.constant 0 : i32
    %c0_i32_0 = arith.constant 0 : i32
    %c0_i32_1 = arith.constant 0 : i32
    return %c0_i32, %c0_i32_0 : i32, i32
  }
  func.func @transform_4(%arg0: i32) -> (i32, i32) {
    %c0_i32 = arith.constant 0 : i32
    %c0_i32_0 = arith.constant 0 : i32
    %c0_i32_1 = arith.constant 0 : i32
    return %c0_i32, %c0_i32_0 : i32, i32
  }
  func.func @transform_5(%arg0: i32) -> (i32, i32) {
    %c0_i32 = arith.constant 0 : i32
    %c0_i32_0 = arith.constant 0 : i32
    %c0_i32_1 = arith.constant 0 : i32
    return %c0_i32, %c0_i32_0 : i32, i32
  }
  func.func @transform_6(%arg0: i32) -> (i32, i32) {
    %c0_i32 = arith.constant 0 : i32
    %c0_i32_0 = arith.constant 0 : i32
    %c0_i32_1 = arith.constant 0 : i32
    return %c0_i32, %c0_i32_0 : i32, i32
  }
  func.func @transform_7(%arg0: i32) -> (i32, i32) {
    %c0_i32 = arith.constant 0 : i32
    %c0_i32_0 = arith.constant 0 : i32
    %c0_i32_1 = arith.constant 0 : i32
    return %c0_i32, %c0_i32_0 : i32, i32
  }
  func.func @transform_8(%arg0: i32) -> (i32, i32) {
    %c0_i32 = arith.constant 0 : i32
    %c0_i32_0 = arith.constant 0 : i32
    %c0_i32_1 = arith.constant 0 : i32
    return %c0_i32, %c0_i32_0 : i32, i32
  }
  func.func @transform_9(%arg0: i32) -> (i32, i32) {
    %c0_i32 = arith.constant 0 : i32
    %c0_i32_0 = arith.constant 0 : i32
    return %arg0, %c0_i32 : i32, i32
  }
}

</mosaic_0001>

<llo_original>
// kernel: tpu_custom_call.1
$region0: #{tpu_custom_call.1}
  #allocation0 [shape = 'u32[]', space=smem, size = 0x4, offset = 0x4, fixed_abs, tag = 'smem constant byte address 0x4 - core index']
  #allocation1 [shape = 'u32[144,128]{1,0:T(1,128)}', space=vmem, size = 0x12000, scoped, tag = 'internal scratch']
  %s0 = inlined_call_operand.vmem [shape: f32[128,16], index: 0, kind: input, shape index: {}]
  %s1 = inlined_call_operand.vmem [shape: bf16[16,256], index: 1, kind: input, shape index: {}]
  %s2 = inlined_call_operand.vmem [shape: f32[1,256], index: 2, kind: input, shape index: {}]
  %s3 = inlined_call_operand.vmem [shape: bf16[256,128], index: 3, kind: input, shape index: {}]
  %s4 = inlined_call_operand.vmem [shape: f32[1,128], index: 4, kind: input, shape index: {}]
  %s5 = inlined_call_operand.vmem [shape: bf16[128,64], index: 5, kind: input, shape index: {}]
  %s6 = inlined_call_operand.vmem [shape: f32[1,64], index: 6, kind: input, shape index: {}]
  %s7 = inlined_call_operand.vmem [shape: bf16[64,4], index: 7, kind: input, shape index: {}]
  %s8 = inlined_call_operand.vmem [shape: f32[1,4], index: 8, kind: input, shape index: {}]
  %s9 = inlined_call_operand.vmem [shape: f32[128,4], index: 9, kind: output, shape index: {}]
  %s10 = sld [smem:[#allocation0]]
  $region46: #{tpu_custom_call.1} parent=0
    _
  %s12 = ssub.s32 1, %s10
  %s13 = scalar_select 0, %s12, %s10
  // Predicated region
  $region2: #{tpu_custom_call.1} parent=0 // pred_check
    _
  $region3: #{tpu_custom_call.1} parent=0 // pred_check_branch
    %15 = sbr.rel (0) target = $region5
  $region4: #{tpu_custom_call.1} parent=0 // pred_region
    _
  $region5: #{tpu_custom_call.1} parent=0 // pred_fallthru
    _
  // Predicated region
  $region6: #{tpu_custom_call.1} parent=0 // pred_check
    _
  $region7: #{tpu_custom_call.1} parent=0 // pred_check_branch
    %17 = sbr.rel (0) target = $region9
  $region8: #{tpu_custom_call.1} parent=0 // pred_region
    _
  $region9: #{tpu_custom_call.1} parent=0 // pred_fallthru
    _
  // Predicated region
  $region10: #{tpu_custom_call.1} parent=0 // pred_check
    _
  $region11: #{tpu_custom_call.1} parent=0 // pred_check_branch
    %19 = sbr.rel (0) target = $region13
  $region12: #{tpu_custom_call.1} parent=0 // pred_region
    _
  $region13: #{tpu_custom_call.1} parent=0 // pred_fallthru
    _
  // Predicated region
  $region14: #{tpu_custom_call.1} parent=0 // pred_check
    _
  $region15: #{tpu_custom_call.1} parent=0 // pred_check_branch
    %21 = sbr.rel (0) target = $region17
  $region16: #{tpu_custom_call.1} parent=0 // pred_region
    _
  $region17: #{tpu_custom_call.1} parent=0 // pred_fallthru
    _
  // Predicated region
  $region18: #{tpu_custom_call.1} parent=0 // pred_check
    _
  $region19: #{tpu_custom_call.1} parent=0 // pred_check_branch
    %23 = sbr.rel (0) target = $region21
  $region20: #{tpu_custom_call.1} parent=0 // pred_region
    _
  $region21: #{tpu_custom_call.1} parent=0 // pred_fallthru
    _
  // Predicated region
  $region22: #{tpu_custom_call.1} parent=0 // pred_check
    _
  $region23: #{tpu_custom_call.1} parent=0 // pred_check_branch
    %25 = sbr.rel (0) target = $region25
  $region24: #{tpu_custom_call.1} parent=0 // pred_region
    _
  $region25: #{tpu_custom_call.1} parent=0 // pred_fallthru
    _
  // Predicated region
  $region26: #{tpu_custom_call.1} parent=0 // pred_check
    _
  $region27: #{tpu_custom_call.1} parent=0 // pred_check_branch
    %27 = sbr.rel (0) target = $region29
  $region28: #{tpu_custom_call.1} parent=0 // pred_region
    _
  $region29: #{tpu_custom_call.1} parent=0 // pred_fallthru
    _
  // Predicated region
  $region30: #{tpu_custom_call.1} parent=0 // pred_check
    _
  $region31: #{tpu_custom_call.1} parent=0 // pred_check_branch
    %29 = sbr.rel (0) target = $region33
  $region32: #{tpu_custom_call.1} parent=0 // pred_region
    _
  $region33: #{tpu_custom_call.1} parent=0 // pred_fallthru
    _
  // Predicated region
  $region34: #{tpu_custom_call.1} parent=0 // pred_check
    _
  $region35: #{tpu_custom_call.1} parent=0 // pred_check_branch
    %31 = sbr.rel (0) target = $region37
  $region36: #{tpu_custom_call.1} parent=0 // pred_region
    _
  $region37: #{tpu_custom_call.1} parent=0 // pred_fallthru
    _
  %v33 = vld [vmem:[%s0] sm:$0xff]
  %v34 = vld [vmem:[%s0 + $0x8] sm:$0xff]
  %v35 = vld [vmem:[%s0 + $0x10] sm:$0xff]
  %v36 = vld [vmem:[%s0 + $0x18] sm:$0xff]
  %v37 = vld [vmem:[%s0 + $0x20] sm:$0xff]
  %v38 = vld [vmem:[%s0 + $0x28] sm:$0xff]
  %v39 = vld [vmem:[%s0 + $0x30] sm:$0xff]
  %v40 = vld [vmem:[%s0 + $0x38] sm:$0xff]
  %v41 = vld [vmem:[%s0 + $0x40] sm:$0xff]
  %v42 = vld [vmem:[%s0 + $0x48] sm:$0xff]
  %v43 = vld [vmem:[%s0 + $0x50] sm:$0xff]
  %v44 = vld [vmem:[%s0 + $0x58] sm:$0xff]
  %v45 = vld [vmem:[%s0 + $0x60] sm:$0xff]
  %v46 = vld [vmem:[%s0 + $0x68] sm:$0xff]
  %v47 = vld [vmem:[%s0 + $0x70] sm:$0xff]
  %v48 = vld [vmem:[%s0 + $0x78] sm:$0xff]
  %v49 = vpack.c.bf16 %v34, %v33
  %v50 = vpack.c.bf16 %v36, %v35
  %v51 = vpack.c.bf16 %v38, %v37
  %v52 = vpack.c.bf16 %v40, %v39
  %v53 = vpack.c.bf16 %v42, %v41
  %v54 = vpack.c.bf16 %v44, %v43
  %v55 = vpack.c.bf16 %v46, %v45
  %v56 = vpack.c.bf16 %v48, %v47
  %v57 = vld [vmem:[%s1] sm:$0xff]
  %v58 = vld [vmem:[%s1 + $0x8] sm:$0xff]
  %v59 = vld [vmem:[%s2] sm:$0x3]
  %v61 = vlaneseq
  %v62 = vshrl.u32 %v61, 7
  %v63 = vsub.s32 0, %v62
  %v64 = vrot.slane %v59, %v63
  %v65 = vlaneseq
  %v66 = vshrl.u32 %v65, 7
  %v67 = vsub.s32 1, %v66
  %v68 = vrot.slane %v59, %v67
  %v73 = vunpack.c.l.b16 %v57
  %v74 = vunpack.c.h.b16 %v57
  %v75 = vunpack.c.l.b16 %v58
  %v76 = vunpack.c.h.b16 %v58
  %v77 = vpack.c.b16 %v75, %v73
  %v78 = vpack.c.b16 %v76, %v74
  %vm81 = vcmask 130048
  %v83 = vsel %vm81, %v49, 0
  %v86 = vsel %vm81, %v50, 0
  %v89 = vsel %vm81, %v51, 0
  %v92 = vsel %vm81, %v52, 0
  %v95 = vsel %vm81, %v53, 0
  %v98 = vsel %vm81, %v54, 0
  %v101 = vsel %vm81, %v55, 0
  %v104 = vsel %vm81, %v56, 0
  %106 = vmatprep.subr.bf16.mxu0 %v78
  %107 = vmatpush1.bf16.msra.mxu0 %v77
  %108 = vmatprep.subr.bf16.mxu0 0
  %109 = vmatpush1.bf16.msra.mxu0 0
  %110 = vmatprep.subr.bf16.mxu0 0
  %111 = vmatpush1.bf16.msra.mxu0 0
  %112 = vmatprep.subr.bf16.mxu0 0
  %113 = vmatpush1.bf16.msra.mxu0 0
  %114 = vmatprep.subr.bf16.mxu0 0
  %115 = vmatpush1.bf16.msra.mxu0 0
  %116 = vmatprep.subr.bf16.mxu0 0
  %117 = vmatpush1.bf16.msra.mxu0 0
  %118 = vmatprep.subr.bf16.mxu0 0
  %119 = vmatpush1.bf16.msra.mxu0 0
  %120 = vmatprep.subr.bf16.mxu0 0
  %121 = vmatpush1.bf16.msra.mxu0 0
  %122 = vmatprep.subr.bf16.mxu0 0
  %123 = vmatpush1.bf16.msra.mxu0 0
  %124 = vmatprep.subr.bf16.mxu0 0
  %125 = vmatpush1.bf16.msra.mxu0 0
  %126 = vmatprep.subr.bf16.mxu0 0
  %127 = vmatpush1.bf16.msra.mxu0 0
  %128 = vmatprep.subr.bf16.mxu0 0
  %129 = vmatpush1.bf16.msra.mxu0 0
  %130 = vmatprep.subr.bf16.mxu0 0
  %131 = vmatpush1.bf16.msra.mxu0 0
  %132 = vmatprep.subr.bf16.mxu0 0
  %133 = vmatpush1.bf16.msra.mxu0 0
  %134 = vmatprep.subr.bf16.mxu0 0
  %135 = vmatpush1.bf16.msra.mxu0 0
  %136 = vmatprep.subr.bf16.mxu0 0
  %137 = vmatpush1.bf16.msra.mxu0 0
  %138 = vmatprep.mubr.bf16.mxu0 0
  %139 = vmatmul.mubr.bf16.gmra.mrb[0].mxu0 %v83
  %v140 = vpop.f32.mrb[0].mxu0
  %v141 = vadd.f32 %v64, %v140
  %v142 = vpop.f32.mrb[0].mxu0
  %v143 = vadd.f32 %v68, %v142
  %v144 = vpop.f32.mrb[0].mxu0
  %v145 = vadd.f32 %v64, %v144
  %v146 = vpop.f32.mrb[0].mxu0
  %v147 = vadd.f32 %v68, %v146
  %148 = vmatprep.mubr.bf16.mxu0 0
  %149 = vmatmul.mubr.bf16.gmra.mrb[0].mxu0 %v86
  %v150 = vpop.f32.mrb[0].mxu0
  %v151 = vadd.f32 %v64, %v150
  %v152 = vpop.f32.mrb[0].mxu0
  %v153 = vadd.f32 %v68, %v152
  %v154 = vpop.f32.mrb[0].mxu0
  %v155 = vadd.f32 %v64, %v154
  %v156 = vpop.f32.mrb[0].mxu0
  %v157 = vadd.f32 %v68, %v156
  %158 = vmatprep.mubr.bf16.mxu0 0
  %159 = vmatmul.mubr.bf16.gmra.mrb[0].mxu0 %v89
  %v160 = vpop.f32.mrb[0].mxu0
  %v161 = vadd.f32 %v64, %v160
  %v162 = vpop.f32.mrb[0].mxu0
  %v163 = vadd.f32 %v68, %v162
  %v164 = vpop.f32.mrb[0].mxu0
  %v165 = vadd.f32 %v64, %v164
  %v166 = vpop.f32.mrb[0].mxu0
  %v167 = vadd.f32 %v68, %v166
  %168 = vmatprep.mubr.bf16.mxu0 0
  %169 = vmatmul.mubr.bf16.gmra.mrb[0].mxu0 %v92
  %v170 = vpop.f32.mrb[0].mxu0
  %v171 = vadd.f32 %v64, %v170
  %v172 = vpop.f32.mrb[0].mxu0
  %v173 = vadd.f32 %v68, %v172
  %v174 = vpop.f32.mrb[0].mxu0
  %v175 = vadd.f32 %v64, %v174
  %v176 = vpop.f32.mrb[0].mxu0
  %v177 = vadd.f32 %v68, %v176
  %178 = vmatprep.mubr.bf16.mxu0 0
  %179 = vmatmul.mubr.bf16.gmra.mrb[0].mxu0 %v95
  %v180 = vpop.f32.mrb[0].mxu0
  %v181 = vadd.f32 %v64, %v180
  %v182 = vpop.f32.mrb[0].mxu0
  %v183 = vadd.f32 %v68, %v182
  %v184 = vpop.f32.mrb[0].mxu0
  %v185 = vadd.f32 %v64, %v184
  %v186 = vpop.f32.mrb[0].mxu0
  %v187 = vadd.f32 %v68, %v186
  %188 = vmatprep.mubr.bf16.mxu0 0
  %189 = vmatmul.mubr.bf16.gmra.mrb[0].mxu0 %v98
  %v190 = vpop.f32.mrb[0].mxu0
  %v191 = vadd.f32 %v64, %v190
  %v192 = vpop.f32.mrb[0].mxu0
  %v193 = vadd.f32 %v68, %v192
  %v194 = vpop.f32.mrb[0].mxu0
  %v195 = vadd.f32 %v64, %v194
  %v196 = vpop.f32.mrb[0].mxu0
  %v197 = vadd.f32 %v68, %v196
  %198 = vmatprep.mubr.bf16.mxu0 0
  %199 = vmatmul.mubr.bf16.gmra.mrb[0].mxu0 %v101
  %v200 = vpop.f32.mrb[0].mxu0
  %v201 = vadd.f32 %v64, %v200
  %v202 = vpop.f32.mrb[0].mxu0
  %v203 = vadd.f32 %v68, %v202
  %v204 = vpop.f32.mrb[0].mxu0
  %v205 = vadd.f32 %v64, %v204
  %v206 = vpop.f32.mrb[0].mxu0
  %v207 = vadd.f32 %v68, %v206
  %208 = vmatprep.mubr.bf16.mxu0 0
  %209 = vmatmul.mubr.bf16.gmra.mrb[0].mxu0 %v104
  %v210 = vpop.f32.mrb[0].mxu0
  %v211 = vadd.f32 %v64, %v210
  %v212 = vpop.f32.mrb[0].mxu0
  %v213 = vadd.f32 %v68, %v212
  %v214 = vpop.f32.mrb[0].mxu0
  %v215 = vadd.f32 %v64, %v214
  %v216 = vpop.f32.mrb[0].mxu0
  %v217 = vadd.f32 %v68, %v216
  %218 = vdwg.mxu0
  %v219 = vmax.f32 %v141, 0.0
  %v220 = vmax.f32 %v143, 0.0
  %v221 = vmax.f32 %v145, 0.0
  %v222 = vmax.f32 %v147, 0.0
  %v223 = vmax.f32 %v151, 0.0
  %v224 = vmax.f32 %v153, 0.0
  %v225 = vmax.f32 %v155, 0.0
  %v226 = vmax.f32 %v157, 0.0
  %v227 = vmax.f32 %v161, 0.0
  %v228 = vmax.f32 %v163, 0.0
  %v229 = vmax.f32 %v165, 0.0
  %v230 = vmax.f32 %v167, 0.0
  %v231 = vmax.f32 %v171, 0.0
  %v232 = vmax.f32 %v173, 0.0
  %v233 = vmax.f32 %v175, 0.0
  %v234 = vmax.f32 %v177, 0.0
  %v235 = vmax.f32 %v181, 0.0
  %v236 = vmax.f32 %v183, 0.0
  %v237 = vmax.f32 %v185, 0.0
  %v238 = vmax.f32 %v187, 0.0
  %v239 = vmax.f32 %v191, 0.0
  %v240 = vmax.f32 %v193, 0.0
  %v241 = vmax.f32 %v195, 0.0
  %v242 = vmax.f32 %v197, 0.0
  %v243 = vmax.f32 %v201, 0.0
  %v244 = vmax.f32 %v203, 0.0
  %v245 = vmax.f32 %v205, 0.0
  %v246 = vmax.f32 %v207, 0.0
  %v247 = vmax.f32 %v211, 0.0
  %v248 = vmax.f32 %v213, 0.0
  %v249 = vmax.f32 %v215, 0.0
  %v250 = vmax.f32 %v217, 0.0
  %v251 = vpack.c.bf16 %v221, %v219
  %v252 = vpack.c.bf16 %v222, %v220
  %v253 = vpack.c.bf16 %v225, %v223
  %v254 = vpack.c.bf16 %v226, %v224
  %v255 = vpack.c.bf16 %v229, %v227
  %v256 = vpack.c.bf16 %v230, %v228
  %v257 = vpack.c.bf16 %v233, %v231
  %v258 = vpack.c.bf16 %v234, %v232
  %v259 = vpack.c.bf16 %v237, %v235
  %v260 = vpack.c.bf16 %v238, %v236
  %v261 = vpack.c.bf16 %v241, %v239
  %v262 = vpack.c.bf16 %v242, %v240
  %v263 = vpack.c.bf16 %v245, %v243
  %v264 = vpack.c.bf16 %v246, %v244
  %v265 = vpack.c.bf16 %v249, %v247
  %v266 = vpack.c.bf16 %v250, %v248
  %v267 = vld [vmem:[%s3] sm:$0xf]
  %v268 = vld [vmem:[%s3 + $0x4] sm:$0xf]
  %v269 = vld [vmem:[%s3 + $0x8] sm:$0xf]
  %v270 = vld [vmem:[%s3 + $0xc] sm:$0xf]
  %v271 = vld [vmem:[%s3 + $0x10] sm:$0xf]
  %v272 = vld [vmem:[%s3 + $0x14] sm:$0xf]
  %v273 = vld [vmem:[%s3 + $0x18] sm:$0xf]
  %v274 = vld [vmem:[%s3 + $0x1c] sm:$0xf]
  %v275 = vld [vmem:[%s3 + $0x20] sm:$0xf]
  %v276 = vld [vmem:[%s3 + $0x24] sm:$0xf]
  %v277 = vld [vmem:[%s3 + $0x28] sm:$0xf]
  %v278 = vld [vmem:[%s3 + $0x2c] sm:$0xf]
  %v279 = vld [vmem:[%s3 + $0x30] sm:$0xf]
  %v280 = vld [vmem:[%s3 + $0x34] sm:$0xf]
  %v281 = vld [vmem:[%s3 + $0x38] sm:$0xf]
  %v282 = vld [vmem:[%s3 + $0x3c] sm:$0xf]
  %v283 = vld [vmem:[%s3 + $0x40] sm:$0xf]
  %v284 = vld [vmem:[%s3 + $0x44] sm:$0xf]
  %v285 = vld [vmem:[%s3 + $0x48] sm:$0xf]
  %v286 = vld [vmem:[%s3 + $0x4c] sm:$0xf]
  %v287 = vld [vmem:[%s3 + $0x50] sm:$0xf]
  %v288 = vld [vmem:[%s3 + $0x54] sm:$0xf]
  %v289 = vld [vmem:[%s3 + $0x58] sm:$0xf]
  %v290 = vld [vmem:[%s3 + $0x5c] sm:$0xf]
  %v291 = vld [vmem:[%s3 + $0x60] sm:$0xf]
  %v292 = vld [vmem:[%s3 + $0x64] sm:$0xf]
  %v293 = vld [vmem:[%s3 + $0x68] sm:$0xf]
  %v294 = vld [vmem:[%s3 + $0x6c] sm:$0xf]
  %v295 = vld [vmem:[%s3 + $0x70] sm:$0xf]
  %v296 = vld [vmem:[%s3 + $0x74] sm:$0xf]
  %v297 = vld [vmem:[%s3 + $0x78] sm:$0xf]
  %v298 = vld [vmem:[%s3 + $0x7c] sm:$0xf]
  %v299 = vld [vmem:[%s4] sm:$0x1]
  %v301 = vlaneseq
  %v302 = vshrl.u32 %v301, 7
  %v303 = vsub.s32 0, %v302
  %v304 = vrot.slane %v299, %v303
  %v338 = vunpack.c.l.b16 %v267
  %v339 = vunpack.c.l.b16 %v268
  %v340 = vunpack.c.l.b16 %v269
  %v341 = vunpack.c.l.b16 %v270
  %v342 = vunpack.c.l.b16 %v271
  %v343 = vunpack.c.l.b16 %v272
  %v344 = vunpack.c.l.b16 %v273
  %v345 = vunpack.c.l.b16 %v274
  %v346 = vunpack.c.l.b16 %v275
  %v347 = vunpack.c.l.b16 %v276
  %v348 = vunpack.c.l.b16 %v277
  %v349 = vunpack.c.l.b16 %v278
  %v350 = vunpack.c.l.b16 %v279
  %v351 = vunpack.c.l.b16 %v280
  %v352 = vunpack.c.l.b16 %v281
  %v353 = vunpack.c.l.b16 %v282
  %v354 = vunpack.c.l.b16 %v283
  %v355 = vunpack.c.l.b16 %v284
  %v356 = vunpack.c.l.b16 %v285
  %v357 = vunpack.c.l.b16 %v286
  %v358 = vunpack.c.l.b16 %v287
  %v359 = vunpack.c.l.b16 %v288
  %v360 = vunpack.c.l.b16 %v289
  %v361 = vunpack.c.l.b16 %v290
  %v362 = vunpack.c.l.b16 %v291
  %v363 = vunpack.c.l.b16 %v292
  %v364 = vunpack.c.l.b16 %v293
  %v365 = vunpack.c.l.b16 %v294
  %v366 = vunpack.c.l.b16 %v295
  %v367 = vunpack.c.l.b16 %v296
  %v368 = vunpack.c.l.b16 %v297
  %v369 = vunpack.c.l.b16 %v298
  %v370 = vpack.c.b16 %v339, %v338
  %v371 = vpack.c.b16 %v341, %v340
  %v372 = vpack.c.b16 %v343, %v342
  %v373 = vpack.c.b16 %v345, %v344
  %v374 = vpack.c.b16 %v347, %v346
  %v375 = vpack.c.b16 %v349, %v348
  %v376 = vpack.c.b16 %v351, %v350
  %v377 = vpack.c.b16 %v353, %v352
  %v378 = vpack.c.b16 %v355, %v354
  %v379 = vpack.c.b16 %v357, %v356
  %v380 = vpack.c.b16 %v359, %v358
  %v381 = vpack.c.b16 %v361, %v360
  %v382 = vpack.c.b16 %v363, %v362
  %v383 = vpack.c.b16 %v365, %v364
  %v384 = vpack.c.b16 %v367, %v366
  %v385 = vpack.c.b16 %v369, %v368
  %402 = vmatprep.subr.bf16.mxu0 0
  %403 = vmatpush1.bf16.msra.mxu0 %v370
  %404 = vmatprep.subr.bf16.mxu0 0
  %405 = vmatpush1.bf16.msra.mxu0 %v371
  %406 = vmatprep.subr.bf16.mxu0 0
  %407 = vmatpush1.bf16.msra.mxu0 %v372
  %408 = vmatprep.subr.bf16.mxu0 0
  %409 = vmatpush1.bf16.msra.mxu0 %v373
  %410 = vmatprep.subr.bf16.mxu0 0
  %411 = vmatpush1.bf16.msra.mxu0 %v374
  %412 = vmatprep.subr.bf16.mxu0 0
  %413 = vmatpush1.bf16.msra.mxu0 %v375
  %414 = vmatprep.subr.bf16.mxu0 0
  %415 = vmatpush1.bf16.msra.mxu0 %v376
  %416 = vmatprep.subr.bf16.mxu0 0
  %417 = vmatpush1.bf16.msra.mxu0 %v377
  %418 = vmatprep.subr.bf16.mxu0 0
  %419 = vmatpush1.bf16.msra.mxu0 %v378
  %420 = vmatprep.subr.bf16.mxu0 0
  %421 = vmatpush1.bf16.msra.mxu0 %v379
  %422 = vmatprep.subr.bf16.mxu0 0
  %423 = vmatpush1.bf16.msra.mxu0 %v380
  %424 = vmatprep.subr.bf16.mxu0 0
  %425 = vmatpush1.bf16.msra.mxu0 %v381
  %426 = vmatprep.subr.bf16.mxu0 0
  %427 = vmatpush1.bf16.msra.mxu0 %v382
  %428 = vmatprep.subr.bf16.mxu0 0
  %429 = vmatpush1.bf16.msra.mxu0 %v383
  %430 = vmatprep.subr.bf16.mxu0 0
  %431 = vmatpush1.bf16.msra.mxu0 %v384
  %432 = vmatprep.subr.bf16.mxu0 0
  %433 = vmatpush1.bf16.msra.mxu0 %v385
  %434 = vmatprep.mubr.bf16.mxu0 %v252
  %435 = vmatmul.mubr.bf16.gmra.mrb[0].mxu0 %v251
  %v436 = vpop.f32.mrb[0].mxu0
  %v437 = vadd.f32 %v304, %v436
  %v438 = vpop.f32.mrb[0].mxu0
  %v439 = vpop.f32.mrb[0].mxu0
  %v440 = vadd.f32 %v304, %v439
  %v441 = vpop.f32.mrb[0].mxu0
  %442 = vmatprep.mubr.bf16.mxu0 %v254
  %443 = vmatmul.mubr.bf16.gmra.mrb[0].mxu0 %v253
  %v444 = vpop.f32.mrb[0].mxu0
  %v445 = vadd.f32 %v304, %v444
  %v446 = vpop.f32.mrb[0].mxu0
  %v447 = vpop.f32.mrb[0].mxu0
  %v448 = vadd.f32 %v304, %v447
  %v449 = vpop.f32.mrb[0].mxu0
  %450 = vmatprep.mubr.bf16.mxu0 %v256
  %451 = vmatmul.mubr.bf16.gmra.mrb[0].mxu0 %v255
  %v452 = vpop.f32.mrb[0].mxu0
  %v453 = vadd.f32 %v304, %v452
  %v454 = vpop.f32.mrb[0].mxu0
  %v455 = vpop.f32.mrb[0].mxu0
  %v456 = vadd.f32 %v304, %v455
  %v457 = vpop.f32.mrb[0].mxu0
  %458 = vmatprep.mubr.bf16.mxu0 %v258
  %459 = vmatmul.mubr.bf16.gmra.mrb[0].mxu0 %v257
  %v460 = vpop.f32.mrb[0].mxu0
  %v461 = vadd.f32 %v304, %v460
  %v462 = vpop.f32.mrb[0].mxu0
  %v463 = vpop.f32.mrb[0].mxu0
  %v464 = vadd.f32 %v304, %v463
  %v465 = vpop.f32.mrb[0].mxu0
  %466 = vmatprep.mubr.bf16.mxu0 %v260
  %467 = vmatmul.mubr.bf16.gmra.mrb[0].mxu0 %v259
  %v468 = vpop.f32.mrb[0].mxu0
  %v469 = vadd.f32 %v304, %v468
  %v470 = vpop.f32.mrb[0].mxu0
  %v471 = vpop.f32.mrb[0].mxu0
  %v472 = vadd.f32 %v304, %v471
  %v473 = vpop.f32.mrb[0].mxu0
  %474 = vmatprep.mubr.bf16.mxu0 %v262
  %475 = vmatmul.mubr.bf16.gmra.mrb[0].mxu0 %v261
  %v476 = vpop.f32.mrb[0].mxu0
  %v477 = vadd.f32 %v304, %v476
  %v478 = vpop.f32.mrb[0].mxu0
  %v479 = vpop.f32.mrb[0].mxu0
  %v480 = vadd.f32 %v304, %v479
  %v481 = vpop.f32.mrb[0].mxu0
  %482 = vmatprep.mubr.bf16.mxu0 %v264
  %483 = vmatmul.mubr.bf16.gmra.mrb[0].mxu0 %v263
  %v484 = vpop.f32.mrb[0].mxu0
  %v485 = vadd.f32 %v304, %v484
  %v486 = vpop.f32.mrb[0].mxu0
  %v487 = vpop.f32.mrb[0].mxu0
  %v488 = vadd.f32 %v304, %v487
  %v489 = vpop.f32.mrb[0].mxu0
  %490 = vmatprep.mubr.bf16.mxu0 %v266
  %491 = vmatmul.mubr.bf16.gmra.mrb[0].mxu0 %v265
  %v492 = vpop.f32.mrb[0].mxu0
  %v493 = vadd.f32 %v304, %v492
  %v494 = vpop.f32.mrb[0].mxu0
  %v495 = vpop.f32.mrb[0].mxu0
  %v496 = vadd.f32 %v304, %v495
  %v497 = vpop.f32.mrb[0].mxu0
  %498 = vdwg.mxu0
  %v499 = vmax.f32 %v437, 0.0
  %v500 = vmax.f32 %v440, 0.0
  %v501 = vmax.f32 %v445, 0.0
  %v502 = vmax.f32 %v448, 0.0
  %v503 = vmax.f32 %v453, 0.0
  %v504 = vmax.f32 %v456, 0.0
  %v505 = vmax.f32 %v461, 0.0
  %v506 = vmax.f32 %v464, 0.0
  %v507 = vmax.f32 %v469, 0.0
  %v508 = vmax.f32 %v472, 0.0
  %v509 = vmax.f32 %v477, 0.0
  %v510 = vmax.f32 %v480, 0.0
  %v511 = vmax.f32 %v485, 0.0
  %v512 = vmax.f32 %v488, 0.0
  %v513 = vmax.f32 %v493, 0.0
  %v514 = vmax.f32 %v496, 0.0
  %v515 = vpack.c.bf16 %v500, %v499
  %v516 = vpack.c.bf16 %v502, %v501
  %v517 = vpack.c.bf16 %v504, %v503
  %v518 = vpack.c.bf16 %v506, %v505
  %v519 = vpack.c.bf16 %v508, %v507
  %v520 = vpack.c.bf16 %v510, %v509
  %v521 = vpack.c.bf16 %v512, %v511
  %v522 = vpack.c.bf16 %v514, %v513
  %v523 = vld [vmem:[%s5] sm:$0xf]
  %v524 = vld [vmem:[%s5 + $0x4] sm:$0xf]
  %v525 = vld [vmem:[%s5 + $0x8] sm:$0xf]
  %v526 = vld [vmem:[%s5 + $0xc] sm:$0xf]
  %v527 = vld [vmem:[%s5 + $0x10] sm:$0xf]
  %v528 = vld [vmem:[%s5 + $0x14] sm:$0xf]
  %v529 = vld [vmem:[%s5 + $0x18] sm:$0xf]
  %v530 = vld [vmem:[%s5 + $0x1c] sm:$0xf]
  %v531 = vld [vmem:[%s5 + $0x20] sm:$0xf]
  %v532 = vld [vmem:[%s5 + $0x24] sm:$0xf]
  %v533 = vld [vmem:[%s5 + $0x28] sm:$0xf]
  %v534 = vld [vmem:[%s5 + $0x2c] sm:$0xf]
  %v535 = vld [vmem:[%s5 + $0x30] sm:$0xf]
  %v536 = vld [vmem:[%s5 + $0x34] sm:$0xf]
  %v537 = vld [vmem:[%s5 + $0x38] sm:$0xf]
  %v538 = vld [vmem:[%s5 + $0x3c] sm:$0xf]
  %v539 = vld [vmem:[%s6] sm:$0x1]
  %v541 = vlaneseq
  %v542 = vshrl.u32 %v541, 7
  %v543 = vsub.s32 0, %v542
  %v544 = vrot.slane %v539, %v543
  %v562 = vunpack.c.l.b16 %v523
  %v563 = vunpack.c.l.b16 %v524
  %v564 = vunpack.c.l.b16 %v525
  %v565 = vunpack.c.l.b16 %v526
  %v566 = vunpack.c.l.b16 %v527
  %v567 = vunpack.c.l.b16 %v528
  %v568 = vunpack.c.l.b16 %v529
  %v569 = vunpack.c.l.b16 %v530
  %v570 = vunpack.c.l.b16 %v531
  %v571 = vunpack.c.l.b16 %v532
  %v572 = vunpack.c.l.b16 %v533
  %v573 = vunpack.c.l.b16 %v534
  %v574 = vunpack.c.l.b16 %v535
  %v575 = vunpack.c.l.b16 %v536
  %v576 = vunpack.c.l.b16 %v537
  %v577 = vunpack.c.l.b16 %v538
  %v578 = vpack.c.b16 %v563, %v562
  %v579 = vpack.c.b16 %v565, %v564
  %v580 = vpack.c.b16 %v567, %v566
  %v581 = vpack.c.b16 %v569, %v568
  %v582 = vpack.c.b16 %v571, %v570
  %v583 = vpack.c.b16 %v573, %v572
  %v584 = vpack.c.b16 %v575, %v574
  %v585 = vpack.c.b16 %v577, %v576
  %594 = vmatprep.subr.bf16.mxu0 0
  %595 = vmatpush1.bf16.msra.mxu0 %v578
  %596 = vmatprep.subr.bf16.mxu0 0
  %597 = vmatpush1.bf16.msra.mxu0 %v579
  %598 = vmatprep.subr.bf16.mxu0 0
  %599 = vmatpush1.bf16.msra.mxu0 %v580
  %600 = vmatprep.subr.bf16.mxu0 0
  %601 = vmatpush1.bf16.msra.mxu0 %v581
  %602 = vmatprep.subr.bf16.mxu0 0
  %603 = vmatpush1.bf16.msra.mxu0 %v582
  %604 = vmatprep.subr.bf16.mxu0 0
  %605 = vmatpush1.bf16.msra.mxu0 %v583
  %606 = vmatprep.subr.bf16.mxu0 0
  %607 = vmatpush1.bf16.msra.mxu0 %v584
  %608 = vmatprep.subr.bf16.mxu0 0
  %609 = vmatpush1.bf16.msra.mxu0 %v585
  %610 = vmatprep.subr.bf16.mxu0 0
  %611 = vmatpush1.bf16.msra.mxu0 0
  %612 = vmatprep.subr.bf16.mxu0 0
  %613 = vmatpush1.bf16.msra.mxu0 0
  %614 = vmatprep.subr.bf16.mxu0 0
  %615 = vmatpush1.bf16.msra.mxu0 0
  %616 = vmatprep.subr.bf16.mxu0 0
  %617 = vmatpush1.bf16.msra.mxu0 0
  %618 = vmatprep.subr.bf16.mxu0 0
  %619 = vmatpush1.bf16.msra.mxu0 0
  %620 = vmatprep.subr.bf16.mxu0 0
  %621 = vmatpush1.bf16.msra.mxu0 0
  %622 = vmatprep.subr.bf16.mxu0 0
  %623 = vmatpush1.bf16.msra.mxu0 0
  %624 = vmatprep.subr.bf16.mxu0 0
  %625 = vmatpush1.bf16.msra.mxu0 0
  %626 = vmatprep.mubr.bf16.mxu0 0
  %627 = vmatmul.mubr.bf16.gmra.mrb[0].mxu0 %v515
  %v628 = vpop.f32.mrb[0].mxu0
  %v629 = vadd.f32 %v544, %v628
  %v630 = vpop.f32.mrb[0].mxu0
  %v631 = vpop.f32.mrb[0].mxu0
  %v632 = vadd.f32 %v544, %v631
  %v633 = vpop.f32.mrb[0].mxu0
  %634 = vmatprep.mubr.bf16.mxu0 0
  %635 = vmatmul.mubr.bf16.gmra.mrb[0].mxu0 %v516
  %v636 = vpop.f32.mrb[0].mxu0
  %v637 = vadd.f32 %v544, %v636
  %v638 = vpop.f32.mrb[0].mxu0
  %v639 = vpop.f32.mrb[0].mxu0
  %v640 = vadd.f32 %v544, %v639
  %v641 = vpop.f32.mrb[0].mxu0
  %642 = vmatprep.mubr.bf16.mxu0 0
  %643 = vmatmul.mubr.bf16.gmra.mrb[0].mxu0 %v517
  %v644 = vpop.f32.mrb[0].mxu0
  %v645 = vadd.f32 %v544, %v644
  %v646 = vpop.f32.mrb[0].mxu0
  %v647 = vpop.f32.mrb[0].mxu0
  %v648 = vadd.f32 %v544, %v647
  %v649 = vpop.f32.mrb[0].mxu0
  %650 = vmatprep.mubr.bf16.mxu0 0
  %651 = vmatmul.mubr.bf16.gmra.mrb[0].mxu0 %v518
  %v652 = vpop.f32.mrb[0].mxu0
  %v653 = vadd.f32 %v544, %v652
  %v654 = vpop.f32.mrb[0].mxu0
  %v655 = vpop.f32.mrb[0].mxu0
  %v656 = vadd.f32 %v544, %v655
  %v657 = vpop.f32.mrb[0].mxu0
  %658 = vmatprep.mubr.bf16.mxu0 0
  %659 = vmatmul.mubr.bf16.gmra.mrb[0].mxu0 %v519
  %v660 = vpop.f32.mrb[0].mxu0
  %v661 = vadd.f32 %v544, %v660
  %v662 = vpop.f32.mrb[0].mxu0
  %v663 = vpop.f32.mrb[0].mxu0
  %v664 = vadd.f32 %v544, %v663
  %v665 = vpop.f32.mrb[0].mxu0
  %666 = vmatprep.mubr.bf16.mxu0 0
  %667 = vmatmul.mubr.bf16.gmra.mrb[0].mxu0 %v520
  %v668 = vpop.f32.mrb[0].mxu0
  %v669 = vadd.f32 %v544, %v668
  %v670 = vpop.f32.mrb[0].mxu0
  %v671 = vpop.f32.mrb[0].mxu0
  %v672 = vadd.f32 %v544, %v671
  %v673 = vpop.f32.mrb[0].mxu0
  %674 = vmatprep.mubr.bf16.mxu0 0
  %675 = vmatmul.mubr.bf16.gmra.mrb[0].mxu0 %v521
  %v676 = vpop.f32.mrb[0].mxu0
  %v677 = vadd.f32 %v544, %v676
  %v678 = vpop.f32.mrb[0].mxu0
  %v679 = vpop.f32.mrb[0].mxu0
  %v680 = vadd.f32 %v544, %v679
  %v681 = vpop.f32.mrb[0].mxu0
  %682 = vmatprep.mubr.bf16.mxu0 0
  %683 = vmatmul.mubr.bf16.gmra.mrb[0].mxu0 %v522
  %v684 = vpop.f32.mrb[0].mxu0
  %v685 = vadd.f32 %v544, %v684
  %v686 = vpop.f32.mrb[0].mxu0
  %v687 = vpop.f32.mrb[0].mxu0
  %v688 = vadd.f32 %v544, %v687
  %v689 = vpop.f32.mrb[0].mxu0
  %690 = vdwg.mxu0
  %v691 = vmax.f32 %v629, 0.0
  %v692 = vmax.f32 %v632, 0.0
  %v693 = vmax.f32 %v637, 0.0
  %v694 = vmax.f32 %v640, 0.0
  %v695 = vmax.f32 %v645, 0.0
  %v696 = vmax.f32 %v648, 0.0
  %v697 = vmax.f32 %v653, 0.0
  %v698 = vmax.f32 %v656, 0.0
  %v699 = vmax.f32 %v661, 0.0
  %v700 = vmax.f32 %v664, 0.0
  %v701 = vmax.f32 %v669, 0.0
  %v702 = vmax.f32 %v672, 0.0
  %v703 = vmax.f32 %v677, 0.0
  %v704 = vmax.f32 %v680, 0.0
  %v705 = vmax.f32 %v685, 0.0
  %v706 = vmax.f32 %v688, 0.0
  %v707 = vpack.c.bf16 %v692, %v691
  %v708 = vpack.c.bf16 %v694, %v693
  %v709 = vpack.c.bf16 %v696, %v695
  %v710 = vpack.c.bf16 %v698, %v697
  %v711 = vpack.c.bf16 %v700, %v699
  %v712 = vpack.c.bf16 %v702, %v701
  %v713 = vpack.c.bf16 %v704, %v703
  %v714 = vpack.c.bf16 %v706, %v705
  %v715 = vld [vmem:[%s7] sm:$0xf]
  %v716 = vld [vmem:[%s7 + $0x4] sm:$0xf]
  %v717 = vld [vmem:[%s7 + $0x8] sm:$0xf]
  %v718 = vld [vmem:[%s7 + $0xc] sm:$0xf]
  %v719 = vld [vmem:[%s7 + $0x10] sm:$0xf]
  %v720 = vld [vmem:[%s7 + $0x14] sm:$0xf]
  %v721 = vld [vmem:[%s7 + $0x18] sm:$0xf]
  %v722 = vld [vmem:[%s7 + $0x1c] sm:$0xf]
  %v723 = vld [vmem:[%s8] sm:$0x1]
  %v725 = vlaneseq
  %v726 = vshrl.u32 %v725, 7
  %v727 = vsub.s32 0, %v726
  %v728 = vrot.slane %v723, %v727
  %v738 = vunpack.c.l.b16 %v715
  %v739 = vunpack.c.l.b16 %v716
  %v740 = vunpack.c.l.b16 %v717
  %v741 = vunpack.c.l.b16 %v718
  %v742 = vunpack.c.l.b16 %v719
  %v743 = vunpack.c.l.b16 %v720
  %v744 = vunpack.c.l.b16 %v721
  %v745 = vunpack.c.l.b16 %v722
  %v746 = vpack.c.b16 %v739, %v738
  %v747 = vpack.c.b16 %v741, %v740
  %v748 = vpack.c.b16 %v743, %v742
  %v749 = vpack.c.b16 %v745, %v744
  %vm754 = vcmask 523264
  %v756 = vsel %vm754, %v707, 0
  %v759 = vsel %vm754, %v708, 0
  %v762 = vsel %vm754, %v709, 0
  %v765 = vsel %vm754, %v710, 0
  %v768 = vsel %vm754, %v711, 0
  %v771 = vsel %vm754, %v712, 0
  %v774 = vsel %vm754, %v713, 0
  %v777 = vsel %vm754, %v714, 0
  %779 = vmatprep.subr.bf16.mxu0 0
  %780 = vmatpush1.bf16.msra.mxu0 %v746
  %781 = vmatprep.subr.bf16.mxu0 0
  %782 = vmatpush1.bf16.msra.mxu0 %v747
  %783 = vmatprep.subr.bf16.mxu0 0
  %784 = vmatpush1.bf16.msra.mxu0 %v748
  %785 = vmatprep.subr.bf16.mxu0 0
  %786 = vmatpush1.bf16.msra.mxu0 %v749
  %787 = vmatprep.subr.bf16.mxu0 0
  %788 = vmatpush1.bf16.msra.mxu0 0
  %789 = vmatprep.subr.bf16.mxu0 0
  %790 = vmatpush1.bf16.msra.mxu0 0
  %791 = vmatprep.subr.bf16.mxu0 0
  %792 = vmatpush1.bf16.msra.mxu0 0
  %793 = vmatprep.subr.bf16.mxu0 0
  %794 = vmatpush1.bf16.msra.mxu0 0
  %795 = vmatprep.subr.bf16.mxu0 0
  %796 = vmatpush1.bf16.msra.mxu0 0
  %797 = vmatprep.subr.bf16.mxu0 0
  %798 = vmatpush1.bf16.msra.mxu0 0
  %799 = vmatprep.subr.bf16.mxu0 0
  %800 = vmatpush1.bf16.msra.mxu0 0
  %801 = vmatprep.subr.bf16.mxu0 0
  %802 = vmatpush1.bf16.msra.mxu0 0
  %803 = vmatprep.subr.bf16.mxu0 0
  %804 = vmatpush1.bf16.msra.mxu0 0
  %805 = vmatprep.subr.bf16.mxu0 0
  %806 = vmatpush1.bf16.msra.mxu0 0
  %807 = vmatprep.subr.bf16.mxu0 0
  %808 = vmatpush1.bf16.msra.mxu0 0
  %809 = vmatprep.subr.bf16.mxu0 0
  %810 = vmatpush1.bf16.msra.mxu0 0
  %811 = vmatprep.mubr.bf16.mxu0 0
  %812 = vmatmul.mubr.bf16.gmra.mrb[0].mxu0 %v756
  %v813 = vpop.f32.mrb[0].mxu0
  %v814 = vadd.f32 %v728, %v813
  %v815 = vpop.f32.mrb[0].mxu0
  %v816 = vpop.f32.mrb[0].mxu0
  %v817 = vadd.f32 %v728, %v816
  %v818 = vpop.f32.mrb[0].mxu0
  %819 = vmatprep.mubr.bf16.mxu0 0
  %820 = vmatmul.mubr.bf16.gmra.mrb[0].mxu0 %v759
  %v821 = vpop.f32.mrb[0].mxu0
  %v822 = vadd.f32 %v728, %v821
  %v823 = vpop.f32.mrb[0].mxu0
  %v824 = vpop.f32.mrb[0].mxu0
  %v825 = vadd.f32 %v728, %v824
  %v826 = vpop.f32.mrb[0].mxu0
  %827 = vmatprep.mubr.bf16.mxu0 0
  %828 = vmatmul.mubr.bf16.gmra.mrb[0].mxu0 %v762
  %v829 = vpop.f32.mrb[0].mxu0
  %v830 = vadd.f32 %v728, %v829
  %v831 = vpop.f32.mrb[0].mxu0
  %v832 = vpop.f32.mrb[0].mxu0
  %v833 = vadd.f32 %v728, %v832
  %v834 = vpop.f32.mrb[0].mxu0
  %835 = vmatprep.mubr.bf16.mxu0 0
  %836 = vmatmul.mubr.bf16.gmra.mrb[0].mxu0 %v765
  %v837 = vpop.f32.mrb[0].mxu0
  %v838 = vadd.f32 %v728, %v837
  %v839 = vpop.f32.mrb[0].mxu0
  %v840 = vpop.f32.mrb[0].mxu0
  %v841 = vadd.f32 %v728, %v840
  %v842 = vpop.f32.mrb[0].mxu0
  %843 = vmatprep.mubr.bf16.mxu0 0
  %844 = vmatmul.mubr.bf16.gmra.mrb[0].mxu0 %v768
  %v845 = vpop.f32.mrb[0].mxu0
  %v846 = vadd.f32 %v728, %v845
  %v847 = vpop.f32.mrb[0].mxu0
  %v848 = vpop.f32.mrb[0].mxu0
  %v849 = vadd.f32 %v728, %v848
  %v850 = vpop.f32.mrb[0].mxu0
  %851 = vmatprep.mubr.bf16.mxu0 0
  %852 = vmatmul.mubr.bf16.gmra.mrb[0].mxu0 %v771
  %v853 = vpop.f32.mrb[0].mxu0
  %v854 = vadd.f32 %v728, %v853
  %v855 = vpop.f32.mrb[0].mxu0
  %v856 = vpop.f32.mrb[0].mxu0
  %v857 = vadd.f32 %v728, %v856
  %v858 = vpop.f32.mrb[0].mxu0
  %859 = vmatprep.mubr.bf16.mxu0 0
  %860 = vmatmul.mubr.bf16.gmra.mrb[0].mxu0 %v774
  %v861 = vpop.f32.mrb[0].mxu0
  %v862 = vadd.f32 %v728, %v861
  %v863 = vpop.f32.mrb[0].mxu0
  %v864 = vpop.f32.mrb[0].mxu0
  %v865 = vadd.f32 %v728, %v864
  %v866 = vpop.f32.mrb[0].mxu0
  %867 = vmatprep.mubr.bf16.mxu0 0
  %868 = vmatmul.mubr.bf16.gmra.mrb[0].mxu0 %v777
  %v869 = vpop.f32.mrb[0].mxu0
  %v870 = vadd.f32 %v728, %v869
  %v871 = vpop.f32.mrb[0].mxu0
  %v872 = vpop.f32.mrb[0].mxu0
  %v873 = vadd.f32 %v728, %v872
  %v874 = vpop.f32.mrb[0].mxu0
  %875 = vdwg.mxu0
  %vm876 = vcmask 31744
  %877 = vst.msk [vmem:[%s9] sm:$0xff] %vm876, %v814
  %878 = vst.msk [vmem:[%s9 + $0x8] sm:$0xff] %vm876, %v817
  %879 = vst.msk [vmem:[%s9 + $0x10] sm:$0xff] %vm876, %v822
  %880 = vst.msk [vmem:[%s9 + $0x18] sm:$0xff] %vm876, %v825
  %881 = vst.msk [vmem:[%s9 + $0x20] sm:$0xff] %vm876, %v830
  %882 = vst.msk [vmem:[%s9 + $0x28] sm:$0xff] %vm876, %v833
  %883 = vst.msk [vmem:[%s9 + $0x30] sm:$0xff] %vm876, %v838
  %884 = vst.msk [vmem:[%s9 + $0x38] sm:$0xff] %vm876, %v841
  %885 = vst.msk [vmem:[%s9 + $0x40] sm:$0xff] %vm876, %v846
  %886 = vst.msk [vmem:[%s9 + $0x48] sm:$0xff] %vm876, %v849
  %887 = vst.msk [vmem:[%s9 + $0x50] sm:$0xff] %vm876, %v854
  %888 = vst.msk [vmem:[%s9 + $0x58] sm:$0xff] %vm876, %v857
  %889 = vst.msk [vmem:[%s9 + $0x60] sm:$0xff] %vm876, %v862
  %890 = vst.msk [vmem:[%s9 + $0x68] sm:$0xff] %vm876, %v865
  %891 = vst.msk [vmem:[%s9 + $0x70] sm:$0xff] %vm876, %v870
  %892 = vst.msk [vmem:[%s9 + $0x78] sm:$0xff] %vm876, %v873
  // Predicated region
  $region38: #{tpu_custom_call.1} parent=0 // pred_check
    _
  $region39: #{tpu_custom_call.1} parent=0 // pred_check_branch
    %894 = sbr.rel (0) target = $region41
  $region40: #{tpu_custom_call.1} parent=0 // pred_region
    _
  $region41: #{tpu_custom_call.1} parent=0 // pred_fallthru
    _
  // Predicated region
  $region42: #{tpu_custom_call.1} parent=0 // pred_check
    _
  $region43: #{tpu_custom_call.1} parent=0 // pred_check_branch
    %896 = sbr.rel (0) target = $region45
  $region44: #{tpu_custom_call.1} parent=0 // pred_region
    _
  $region45: #{tpu_custom_call.1} parent=0 // pred_fallthru
    _

</llo_original>
